<compile_context>
chip_gen: v5e
topology: v5e:2x2
jax: 0.10.0
libtpu: 0.0.40
codegen_flags: <defaults>
</compile_context>

<pallas_src>
import functools

import jax
import jax.numpy as jnp
from jax.experimental import pallas as pl
from jax.experimental.pallas import tpu as pltpu

LN_EPS = 1e-10   # matches nn.LayerNorm(output_dim, eps=1e-10); fragile for constant
                 # rows but kept to mirror the PyTorch module exactly.


def _block_kernel(adj_ref, x_ref, x0_ref, w_ref, m_ref, p_ref, o_ref, *,
                  beta, mxu_dtype):
    """One grid step = Bt batch elements; both gconv+LN layers fused.

    adj_ref : (J, J)       (1 - beta) * A_hat, pre-cast to mxu_dtype (shared)
    x_ref   : (J, Bt*C)    current features, lane-dense slab (batch-major lanes)
    x0_ref  : (J, Bt*C)    initial features (residual source)
    w_ref   : (Bt*C, Bt*C) block-diagonal gconv weight, mxu_dtype (shared)
    m_ref   : (Bt*C, Bt*C) per-C-group averaging matrix, f32 (shared)
    p_ref   : (3, Bt*C)    rows = [bias, LN gamma, LN beta], lane-tiled, f32
    o_ref   : (J, Bt*C)    output slab
    """
    j, n = o_ref.shape

    adj = adj_ref[...]                 # already mxu_dtype, already holds (1 - beta)
    w_bd = w_ref[...]                  # mxu_dtype block-diag W
    m_grp = m_ref[...]                 # f32 group-mean matrix (LayerNorm reductions)

    # Load the packed params once and broadcast once (reused by both layers).
    params = p_ref[...]                # (3, N) f32
    bias = jnp.broadcast_to(params[0:1, :], (j, n))
    gamma = jnp.broadcast_to(params[1:2, :], (j, n))
    beta_ln = jnp.broadcast_to(params[2:3, :], (j, n))
    bx0 = beta * x0_ref[...]           # (J, N) f32, reused by both layers

    def gconv_ln(xin):                 # xin: (J, N) f32
        # ((1-beta)*A_hat) @ x : lane-dense (J, N) RHS on the MXU, f32 accumulation.
        h = jnp.dot(adj, xin.astype(mxu_dtype), preferred_element_type=jnp.float32)
        s = h + bx0                                                   # f32 blend
        # Per-node linear layer via block-diagonal W (still lane-dense on the MXU).
        y = jnp.dot(s.astype(mxu_dtype), w_bd,
                    preferred_element_type=jnp.float32) + bias
        # LayerNorm over each C-lane group; reductions via the f32 group-mean matrix
        # on the MXU, everything else strictly f32 on VPU/EUP (v5e-safe).
        mean = jnp.dot(y, m_grp, preferred_element_type=jnp.float32)
        d = y - mean
        var = jnp.dot(d * d, m_grp, preferred_element_type=jnp.float32)
        return d * jax.lax.rsqrt(var + LN_EPS) * gamma + beta_ln

    h1 = gconv_ln(x_ref[...])          # layer-1 result never leaves VMEM / vregs
    o_ref[...] = gconv_ln(h1)          # full 128-lane (unmasked) store


def graph_conv_block_i(x, x0, adj, w, b, gamma, beta_ln, *, beta,
                       mxu_dtype=jnp.bfloat16, batch_block=None):
    """GraphConvBlockI.forward: gconv -> LN -> gconv -> LN (shared params), fused.

    beta is a static constructor hyperparameter, baked in at trace time (folded into
    the adjacency). x, x0: (B, J, C); adj: (J, J); w: (C, C); b/gamma/beta_ln: (C,).
    """
    B, J, C = x.shape
    # Batch elements per grid step: make the lane dimension Bt*C a multiple of 128
    # where possible (lane-dense MXU tiles and unmasked stores).
    if batch_block is None:
        batch_block = max(1, 128 // C) if C < 128 else 1
    Bt = max(1, int(batch_block))
    Bp = Bt * ((B + Bt - 1) // Bt)
    lane = Bt * C

    if Bp != B:
        # Zero-pad the batch; padded columns never mix with real ones (the adjacency
        # mixes nodes, not batch elements) and LayerNorm of the bias row is finite.
        pad = Bp - B
        x = jnp.concatenate([x, jnp.zeros((pad, J, C), x.dtype)], axis=0)
        x0 = jnp.concatenate([x0, jnp.zeros((pad, J, C), x0.dtype)], axis=0)

    # Shared operands prepared ONCE in the wrapper, pre-cast to the MXU dtype.
    adj_scaled = ((1.0 - float(beta)) * adj).astype(mxu_dtype)            # (J, J)
    w_bd = jnp.kron(jnp.eye(Bt, dtype=jnp.float32),
                    w.astype(jnp.float32)).astype(mxu_dtype)              # (N, N)
    m_grp = jnp.kron(jnp.eye(Bt, dtype=jnp.float32),
                     jnp.full((C, C), 1.0 / C, dtype=jnp.float32))        # (N, N) f32
    params = jnp.stack([                                                   # (3, N)
        jnp.tile(b.reshape(C).astype(jnp.float32), Bt),
        jnp.tile(gamma.reshape(C).astype(jnp.float32), Bt),
        jnp.tile(beta_ln.reshape(C).astype(jnp.float32), Bt)])

    # Lane-dense activation slabs: (B, J, C) -> (J, B*C); each grid step sees a
    # (J, Bt*C) block. The blend / LayerNorm path stays f32, so slabs stay f32.
    x_slab = jnp.transpose(x, (1, 0, 2)).reshape(J, Bp * C).astype(jnp.float32)
    x0_slab = jnp.transpose(x0, (1, 0, 2)).reshape(J, Bp * C).astype(jnp.float32)

    n_steps = Bp // Bt
    itm = adj_scaled.dtype.itemsize
    cost = pl.CostEstimate(
        flops=int(4 * n_steps * J * lane * (J + 3 * lane)),        # 2 layers, 4 dots
        transcendentals=int(2 * J * Bp * C),                       # rsqrt per element
        bytes_accessed=int(J * J * itm + lane * lane * itm + lane * lane * 4
                           + 3 * lane * 4 + 3 * J * Bp * C * 4),
    )

    kernel = functools.partial(_block_kernel, beta=float(beta), mxu_dtype=mxu_dtype)
    # TODO(synk): for production J (thousands of nodes) the resident (J, J) adjacency
    # should be single-buffered (its index_map is constant) and, on v7x's 64 MiB VMEM,
    # tiled over a k-reduction axis with a resident (J, Bt*C) accumulator so adjacency
    # HBM traffic stays at ~one pass (the kernel is adjacency-bandwidth-bound there).
    out_slab = pl.pallas_call(
        kernel,
        out_shape=jax.ShapeDtypeStruct((J, Bp * C), jnp.float32),
        grid_spec=pltpu.PrefetchScalarGridSpec(
            num_scalar_prefetch=0,
            grid=(n_steps,),
            in_specs=[
                pl.BlockSpec((J, J), lambda i: (0, 0)),         # (1-beta)*A_hat
                pl.BlockSpec((J, lane), lambda i: (0, i)),      # x slab
                pl.BlockSpec((J, lane), lambda i: (0, i)),      # x0 slab
                pl.BlockSpec((lane, lane), lambda i: (0, 0)),   # block-diag W
                pl.BlockSpec((lane, lane), lambda i: (0, 0)),   # LN group-mean matrix
                pl.BlockSpec((3, lane), lambda i: (0, 0)),      # [bias; gamma; beta]
            ],
            out_specs=pl.BlockSpec((J, lane), lambda i: (0, i)),
        ),
        compiler_params=pltpu.CompilerParams(
            dimension_semantics=("parallel",),       # batch steps -> v7x megacore
            vmem_limit_bytes=64 * 1024 * 1024),
        cost_estimate=cost,
    )(adj_scaled, x_slab, x0_slab, w_bd, m_grp, params)

    out = jnp.transpose(out_slab.reshape(J, Bp, C), (1, 0, 2))
    return out[:B]


# -------------------- pure-JAX reference for sanity check --------------------
def _ref_layer(x, x0, adj, w, b, gamma, beta_ln, beta, mxu_dtype):
    adj_s = ((1.0 - beta) * adj).astype(mxu_dtype)
    h = jnp.einsum("jk,bkc->bjc", adj_s, x.astype(mxu_dtype),
                   preferred_element_type=jnp.float32)
    s = h + beta * x0
    y = jnp.einsum("bjc,cd->bjd", s.astype(mxu_dtype), w.astype(mxu_dtype),
                   preferred_element_type=jnp.float32) + b
    mean = jnp.mean(y, axis=-1, keepdims=True)
    var = jnp.mean((y - mean) ** 2, axis=-1, keepdims=True)
    return (y - mean) / jnp.sqrt(var + LN_EPS) * gamma + beta_ln


def _ref_block(x, x0, adj, w, b, gamma, beta_ln, beta, mxu_dtype=jnp.float32):
    h = _ref_layer(x, x0, adj, w, b, gamma, beta_ln, beta, mxu_dtype)
    return _ref_layer(h, x0, adj, w, b, gamma, beta_ln, beta, mxu_dtype)


if __name__ == "__main__":
    B, J, C = 8, 16, 32          # batch, graph nodes (joints), input_dim == output_dim
    beta = 0.3

    key = jax.random.PRNGKey(0)
    k_x, k_x0, k_w, k_b, k_g, k_bl = jax.random.split(key, 6)

    x = jax.random.normal(k_x, (B, J, C), dtype=jnp.float32)
    x0 = jax.random.normal(k_x0, (B, J, C), dtype=jnp.float32)

    # Deterministic symmetrically-normalized chain-graph adjacency with self-loops.
    a = jnp.eye(J, dtype=jnp.float32)
    a = a + jnp.eye(J, k=1, dtype=jnp.float32) + jnp.eye(J, k=-1, dtype=jnp.float32)
    deg = jnp.sum(a, axis=-1)
    d_inv_sqrt = 1.0 / jnp.sqrt(deg)
    adj = a * d_inv_sqrt[:, None] * d_inv_sqrt[None, :]

    # FlexGConv / LayerNorm parameters (deterministic, non-trivial init).
    w = jax.random.normal(k_w, (C, C), dtype=jnp.float32) * 0.05
    b = 0.1 * jax.random.normal(k_b, (C,), dtype=jnp.float32)
    gamma = 1.0 + 0.1 * jax.random.normal(k_g, (C,), dtype=jnp.float32)
    beta_ln = 0.1 * jax.random.normal(k_bl, (C,), dtype=jnp.float32)

    # Exact f32 MXU path (correct on all generations incl. v5e).
    out_f32 = graph_conv_block_i(x, x0, adj, w, b, gamma, beta_ln, beta=beta,
                                 mxu_dtype=jnp.float32)
    out_f32 = jax.block_until_ready(out_f32)
    ref_f32 = _ref_block(x, x0, adj, w, b, gamma, beta_ln, beta, jnp.float32)
    assert out_f32.shape == (B, J, C)
    assert jnp.max(jnp.abs(out_f32 - ref_f32)) < 1e-4, "f32 Pallas kernel mismatch"

    # Default path: bf16 MXU operands, f32 accumulation + f32 blend/LayerNorm.
    out_bf16 = graph_conv_block_i(x, x0, adj, w, b, gamma, beta_ln, beta=beta)
    out_bf16 = jax.block_until_ready(out_bf16)
    ref_bf16 = _ref_block(x, x0, adj, w, b, gamma, beta_ln, beta, jnp.bfloat16)
    assert jnp.max(jnp.abs(out_bf16 - ref_bf16)) < 5e-3, "bf16 Pallas kernel mismatch"

    # Small-batch path (B=2 < Bt=4): batch is zero-padded into one lane-dense step.
    out_small = graph_conv_block_i(x[:2], x0[:2], adj, w, b, gamma, beta_ln,
                                   beta=beta, mxu_dtype=jnp.float32)
    out_small = jax.block_until_ready(out_small)
    assert out_small.shape == (2, J, C)
    assert jnp.max(jnp.abs(out_small - ref_f32[:2])) < 1e-4, "padded-batch mismatch"

    print("KERNEL_OK")
</pallas_src>

<mosaic_0001>
module attributes {stable_mosaic.version = 11 : i64} {
  func.func @_block_kernel(%arg0: i32, %arg1: memref<16x16xf32, #tpu.memory_space<vmem>>, %arg2: memref<16x128xf32, #tpu.memory_space<vmem>>, %arg3: memref<16x128xf32, #tpu.memory_space<vmem>>, %arg4: memref<128x128xf32, #tpu.memory_space<vmem>>, %arg5: memref<128x128xf32, #tpu.memory_space<vmem>>, %arg6: memref<3x128xf32, #tpu.memory_space<vmem>>, %arg7: memref<16x128xf32, #tpu.memory_space<vmem>>) attributes {dimension_semantics = [#tpu.dimension_semantics<parallel>], iteration_bounds = array<i64: 2>, scalar_prefetch = 0 : i64, scratch_operands = 0 : i64, tpu.core_type = #tpu.core_type<tc>, window_params = [{pipeline_mode = #tpu.pipeline_mode<synchronous>, transform_indices = @transform_0, window_bounds = array<i64: 16, 16>}, {transform_indices = @transform_1, window_bounds = array<i64: 16, 128>}, {transform_indices = @transform_2, window_bounds = array<i64: 16, 128>}, {pipeline_mode = #tpu.pipeline_mode<synchronous>, transform_indices = @transform_3, window_bounds = array<i64: 128, 128>}, {pipeline_mode = #tpu.pipeline_mode<synchronous>, transform_indices = @transform_4, window_bounds = array<i64: 128, 128>}, {pipeline_mode = #tpu.pipeline_mode<synchronous>, transform_indices = @transform_5, window_bounds = array<i64: 3, 128>}, {transform_indices = @transform_6, window_bounds = array<i64: 16, 128>}]} {
    %c0 = arith.constant 0 : index
    %c0_0 = arith.constant 0 : index
    %0 = vector.load %arg1[%c0, %c0_0] : memref<16x16xf32, #tpu.memory_space<vmem>>, vector<16x16xf32>
    %c0_1 = arith.constant 0 : index
    %c0_2 = arith.constant 0 : index
    %1 = vector.load %arg4[%c0_1, %c0_2] : memref<128x128xf32, #tpu.memory_space<vmem>>, vector<128x128xf32>
    %c0_3 = arith.constant 0 : index
    %c0_4 = arith.constant 0 : index
    %2 = vector.load %arg5[%c0_3, %c0_4] : memref<128x128xf32, #tpu.memory_space<vmem>>, vector<128x128xf32>
    %c0_5 = arith.constant 0 : index
    %c0_6 = arith.constant 0 : index
    %3 = vector.load %arg6[%c0_5, %c0_6] : memref<3x128xf32, #tpu.memory_space<vmem>>, vector<3x128xf32>
    %4 = vector.extract_strided_slice %3 {offsets = [0, 0], sizes = [1, 128], strides = [1, 1]} : vector<3x128xf32> to vector<1x128xf32>
    %5 = vector.shape_cast %4 : vector<1x128xf32> to vector<1x128xf32>
    %6 = vector.broadcast %5 : vector<1x128xf32> to vector<16x128xf32>
    %7 = vector.extract_strided_slice %3 {offsets = [1, 0], sizes = [1, 128], strides = [1, 1]} : vector<3x128xf32> to vector<1x128xf32>
    %8 = vector.shape_cast %7 : vector<1x128xf32> to vector<1x128xf32>
    %9 = vector.broadcast %8 : vector<1x128xf32> to vector<16x128xf32>
    %10 = vector.extract_strided_slice %3 {offsets = [2, 0], sizes = [1, 128], strides = [1, 1]} : vector<3x128xf32> to vector<1x128xf32>
    %11 = vector.shape_cast %10 : vector<1x128xf32> to vector<1x128xf32>
    %12 = vector.broadcast %11 : vector<1x128xf32> to vector<16x128xf32>
    %c0_7 = arith.constant 0 : index
    %c0_8 = arith.constant 0 : index
    %13 = vector.load %arg3[%c0_7, %c0_8] : memref<16x128xf32, #tpu.memory_space<vmem>>, vector<16x128xf32>
    %cst = arith.constant 3.000000e-01 : f32
    %14 = vector.broadcast %cst : f32 to vector<16x128xf32>
    %15 = arith.mulf %14, %13 : vector<16x128xf32>
    %c0_9 = arith.constant 0 : index
    %c0_10 = arith.constant 0 : index
    %16 = vector.load %arg2[%c0_9, %c0_10] : memref<16x128xf32, #tpu.memory_space<vmem>>, vector<16x128xf32>
    %cst_11 = arith.constant dense<0.000000e+00> : vector<16x128xf32>
    %17 = tpu.matmul %0, %16, %cst_11 {dimension_numbers = #tpu.dot_dimension_numbers<[1], [0], [0], [1], [0, 0, 1, 1], [], []>} : vector<16x16xf32>, vector<16x128xf32>, vector<16x128xf32> -> vector<16x128xf32>
    %18 = arith.addf %17, %15 : vector<16x128xf32>
    %cst_12 = arith.constant dense<0.000000e+00> : vector<16x128xf32>
    %19 = tpu.matmul %18, %1, %cst_12 {dimension_numbers = #tpu.dot_dimension_numbers<[1], [0], [0], [1], [0, 0, 1, 1], [], []>} : vector<16x128xf32>, vector<128x128xf32>, vector<16x128xf32> -> vector<16x128xf32>
    %20 = arith.addf %19, %6 : vector<16x128xf32>
    %cst_13 = arith.constant dense<0.000000e+00> : vector<16x128xf32>
    %21 = tpu.matmul %20, %2, %cst_13 {dimension_numbers = #tpu.dot_dimension_numbers<[1], [0], [0], [1], [0, 0, 1, 1], [], []>} : vector<16x128xf32>, vector<128x128xf32>, vector<16x128xf32> -> vector<16x128xf32>
    %22 = arith.subf %20, %21 : vector<16x128xf32>
    %23 = arith.mulf %22, %22 : vector<16x128xf32>
    %cst_14 = arith.constant dense<0.000000e+00> : vector<16x128xf32>
    %24 = tpu.matmul %23, %2, %cst_14 {dimension_numbers = #tpu.dot_dimension_numbers<[1], [0], [0], [1], [0, 0, 1, 1], [], []>} : vector<16x128xf32>, vector<128x128xf32>, vector<16x128xf32> -> vector<16x128xf32>
    %cst_15 = arith.constant 1.000000e-10 : f32
    %25 = vector.broadcast %cst_15 : f32 to vector<16x128xf32>
    %26 = arith.addf %24, %25 : vector<16x128xf32>
    %27 = math.rsqrt %26 : vector<16x128xf32>
    %28 = arith.mulf %22, %27 : vector<16x128xf32>
    %29 = arith.mulf %28, %9 : vector<16x128xf32>
    %30 = arith.addf %29, %12 : vector<16x128xf32>
    %cst_16 = arith.constant dense<0.000000e+00> : vector<16x128xf32>
    %31 = tpu.matmul %0, %30, %cst_16 {dimension_numbers = #tpu.dot_dimension_numbers<[1], [0], [0], [1], [0, 0, 1, 1], [], []>} : vector<16x16xf32>, vector<16x128xf32>, vector<16x128xf32> -> vector<16x128xf32>
    %32 = arith.addf %31, %15 : vector<16x128xf32>
    %cst_17 = arith.constant dense<0.000000e+00> : vector<16x128xf32>
    %33 = tpu.matmul %32, %1, %cst_17 {dimension_numbers = #tpu.dot_dimension_numbers<[1], [0], [0], [1], [0, 0, 1, 1], [], []>} : vector<16x128xf32>, vector<128x128xf32>, vector<16x128xf32> -> vector<16x128xf32>
    %34 = arith.addf %33, %6 : vector<16x128xf32>
    %cst_18 = arith.constant dense<0.000000e+00> : vector<16x128xf32>
    %35 = tpu.matmul %34, %2, %cst_18 {dimension_numbers = #tpu.dot_dimension_numbers<[1], [0], [0], [1], [0, 0, 1, 1], [], []>} : vector<16x128xf32>, vector<128x128xf32>, vector<16x128xf32> -> vector<16x128xf32>
    %36 = arith.subf %34, %35 : vector<16x128xf32>
    %37 = arith.mulf %36, %36 : vector<16x128xf32>
    %cst_19 = arith.constant dense<0.000000e+00> : vector<16x128xf32>
    %38 = tpu.matmul %37, %2, %cst_19 {dimension_numbers = #tpu.dot_dimension_numbers<[1], [0], [0], [1], [0, 0, 1, 1], [], []>} : vector<16x128xf32>, vector<128x128xf32>, vector<16x128xf32> -> vector<16x128xf32>
    %cst_20 = arith.constant 1.000000e-10 : f32
    %39 = vector.broadcast %cst_20 : f32 to vector<16x128xf32>
    %40 = arith.addf %38, %39 : vector<16x128xf32>
    %41 = math.rsqrt %40 : vector<16x128xf32>
    %42 = arith.mulf %36, %41 : vector<16x128xf32>
    %43 = arith.mulf %42, %9 : vector<16x128xf32>
    %44 = arith.addf %43, %12 : vector<16x128xf32>
    %c0_21 = arith.constant 0 : index
    %c0_22 = arith.constant 0 : index
    %45 = vector.load %arg7[%c0_21, %c0_22] : memref<16x128xf32, #tpu.memory_space<vmem>>, vector<16x128xf32>
    tpu.vector_store %arg7[%c0_21, %c0_22], %44 {strides = array<i32>} : memref<16x128xf32, #tpu.memory_space<vmem>>, vector<16x128xf32>,
    return
  }
  func.func @transform_0(%arg0: i32) -> (i32, i32) {
    %c0_i32 = arith.constant 0 : i32
    %c0_i32_0 = arith.constant 0 : i32
    %c0_i32_1 = arith.constant 0 : i32
    return %c0_i32, %c0_i32_0 : i32, i32
  }
  func.func @transform_1(%arg0: i32) -> (i32, i32) {
    %c0_i32 = arith.constant 0 : i32
    %c0_i32_0 = arith.constant 0 : i32
    return %c0_i32, %arg0 : i32, i32
  }
  func.func @transform_2(%arg0: i32) -> (i32, i32) {
    %c0_i32 = arith.constant 0 : i32
    %c0_i32_0 = arith.constant 0 : i32
    return %c0_i32, %arg0 : i32, i32
  }
  func.func @transform_3(%arg0: i32) -> (i32, i32) {
    %c0_i32 = arith.constant 0 : i32
    %c0_i32_0 = arith.constant 0 : i32
    %c0_i32_1 = arith.constant 0 : i32
    return %c0_i32, %c0_i32_0 : i32, i32
  }
  func.func @transform_4(%arg0: i32) -> (i32, i32) {
    %c0_i32 = arith.constant 0 : i32
    %c0_i32_0 = arith.constant 0 : i32
    %c0_i32_1 = arith.constant 0 : i32
    return %c0_i32, %c0_i32_0 : i32, i32
  }
  func.func @transform_5(%arg0: i32) -> (i32, i32) {
    %c0_i32 = arith.constant 0 : i32
    %c0_i32_0 = arith.constant 0 : i32
    %c0_i32_1 = arith.constant 0 : i32
    return %c0_i32, %c0_i32_0 : i32, i32
  }
  func.func @transform_6(%arg0: i32) -> (i32, i32) {
    %c0_i32 = arith.constant 0 : i32
    %c0_i32_0 = arith.constant 0 : i32
    return %c0_i32, %arg0 : i32, i32
  }
}

</mosaic_0001>

<llo_original>
// kernel: tpu_custom_call.1
$region0: #{tpu_custom_call.1}
  #allocation0 [shape = 'u32[]', space=smem, size = 0x4, offset = 0x4, fixed_abs, tag = 'smem constant byte address 0x4 - core index']
  #allocation1 [shape = 'u32[72,128]{1,0:T(1,128)}', space=vmem, size = 0x9000, scoped, tag = 'internal scratch']
  %s0 = inlined_call_operand.hbm [shape: f32[16,16], index: 0, kind: input, shape index: {}]
  %s1 = inlined_call_operand.hbm [shape: f32[16,256], index: 1, kind: input, shape index: {}]
  %s2 = inlined_call_operand.hbm [shape: f32[16,256], index: 2, kind: input, shape index: {}]
  %s3 = inlined_call_operand.hbm [shape: f32[128,128], index: 3, kind: input, shape index: {}]
  %s4 = inlined_call_operand.hbm [shape: f32[128,128], index: 4, kind: input, shape index: {}]
  %s5 = inlined_call_operand.vmem [shape: f32[3,128], index: 5, kind: input, shape index: {}]
  %s6 = inlined_call_operand.hbm [shape: f32[16,256], index: 6, kind: output, shape index: {}]
  %s7 = sld [smem:[#allocation0]]
  $region77: #{tpu_custom_call.1} parent=0
    _
  %s9 = ssub.s32 1, %s7
  %s10 = scalar_select 0, %s9, %s7
  $region1: #{tpu_custom_call.1} parent=0
    #allocation2 [shape = 'u8[8192]{0}', space=vmem, size = 0x2000, scoped, tag = 'input window, operand 0, single buffered']
    #allocation3 [shape = 's32[2]{0}', space=sflag, size = 0x8, scoped, tag = 'scoped memory for tpu_custom_call.1']
    #allocation4 [shape = 's32[2]{0}', space=sflag, size = 0x8, scoped, tag = 'scoped memory for tpu_custom_call.1']
    #allocation5 [shape = 'u8[16384]{0}', space=vmem, size = 0x4000, scoped, tag = 'input window, operand 1']
    #allocation6 [shape = 's32[2]{0}', space=sflag, size = 0x8, scoped, tag = 'scoped memory for tpu_custom_call.1']
    #allocation7 [shape = 'u8[16384]{0}', space=vmem, size = 0x4000, scoped, tag = 'input window, operand 2']
    #allocation8 [shape = 'u8[65536]{0}', space=vmem, size = 0x10000, scoped, tag = 'input window, operand 3, single buffered']
    #allocation9 [shape = 's32[1]{0}', space=sflag, size = 0x4, scoped, tag = 'scoped memory for tpu_custom_call.1']
    #allocation10 [shape = 'u8[65536]{0}', space=vmem, size = 0x10000, scoped, tag = 'input window, operand 4, single buffered']
    #allocation11 [shape = 'u8[16384]{0}', space=vmem, size = 0x4000, scoped, tag = 'output window, operand 0']
    %11 = vsyncpa [#allocation3], 0
    %12 = vsyncpa [#allocation6], 0
    %s13 = scalar_lea.sflag [#allocation6], 1
    %14 = vsyncpa %s13, 0
    %15 = vsyncpa [#allocation9], 0
    %16 = vsyncpa [#allocation4], 0
    %s17 = scalar_lea.sflag [#allocation4], 1
    %18 = vsyncpa %s17, 0
    loop: start=0, step=1, limit=4
    $region2: #{tpu_custom_call.1} parent=1 // loop_pre_header
      _
    $region3: #{tpu_custom_call.1} parent=1 // loop_header
      %s20 = sphi 0, %s24
      %p21 = scmp.ge.s32.totalorder %s20, 4
      %s28 = sphi 0, %s28
      %s30 = sphi 0, %s28
      %s31 = sphi 0, %s30
      %s45 = sphi 0, %s31
      %s51 = sphi 0, %s53
      %s54 = sphi 0, %s51
      %s55 = sphi 0, %s54
      %s71 = sphi 0, %s55
      %s77 = sphi 0, %s79
      %s80 = sphi 0, %s77
      %s81 = sphi 0, %s80
      %s97 = sphi 0, %s81
      %s101 = sphi 0, %s101
      %s103 = sphi 0, %s101
      %s104 = sphi 0, %s103
      %s118 = sphi 0, %s104
      %s122 = sphi 0, %s122
      %s124 = sphi 0, %s122
      %s125 = sphi 0, %s124
      %s139 = sphi 0, %s125
      %s143 = sphi 0, %s143
      %s145 = sphi 0, %s143
      %s146 = sphi 0, %s145
      %s160 = sphi 0, %s146
      %s166 = sphi 0, %s168
      %s169 = sphi 0, %s166
      %s170 = sphi 0, %s169
      %s186 = sphi 0, %s170
    $region4: #{tpu_custom_call.1} parent=1 // loop_header_branch
      %23 = sbr.rel (%p21) target = $region8
    $region5: #{tpu_custom_call.1} parent=1 // loop_body
      %s25 = ssub.s32 %s20, 1
      %s26 = ssub.s32 %s20, 2
      %s27 = sadd.s32 %s20, 1
      %s29 = sadd.s32 %s28, 1
      %p32 = scmp.eq.s32.totalorder %s20, 1
      %p33 = scmp.ne.s32.totalorder %s28, %s30
      %p34 = scmp.eq.s32.totalorder %s20, 0
      %p35 = por %p33, %p34
      %p36 = scmp.ne.s32.totalorder %s28, %s30
      %p37 = scmp.eq.s32.totalorder %s25, 1
      %p38 = por %p36, %p37
      %p39 = scmp.ne.s32.totalorder %s30, %s31
      %p40 = scmp.eq.s32.totalorder %s25, 0
      %p41 = por %p39, %p40
      %p42 = scmp.ne.s32.totalorder %s30, %s31
      %p43 = scmp.eq.s32.totalorder %s26, 1
      %p44 = por %p42, %p43
      %p46 = scmp.ne.s32.totalorder %s31, %s45
      %p47 = scmp.eq.s32.totalorder %s26, 0
      %p48 = por %p46, %p47
      %s49 = ssub.s32 %s20, %s27
      %p50 = scmp.eq.s32.totalorder %s49, 0
      %s52 = sadd.s32 %s51, 1
      %s53 = scalar_select %p50, %s51, %s52
      %p56 = pneg %p50
      %p57 = scmp.eq.s32.totalorder %s20, 1
      %p58 = por %p56, %p57
      %p59 = scmp.ne.s32.totalorder %s51, %s54
      %p60 = scmp.eq.s32.totalorder %s20, 0
      %p61 = por %p59, %p60
      %p62 = scmp.ne.s32.totalorder %s51, %s54
      %p63 = scmp.eq.s32.totalorder %s25, 1
      %p64 = por %p62, %p63
      %p65 = scmp.ne.s32.totalorder %s54, %s55
      %p66 = scmp.eq.s32.totalorder %s25, 0
      %p67 = por %p65, %p66
      %p68 = scmp.ne.s32.totalorder %s54, %s55
      %p69 = scmp.eq.s32.totalorder %s26, 1
      %p70 = por %p68, %p69
      %p72 = scmp.ne.s32.totalorder %s55, %s71
      %p73 = scmp.eq.s32.totalorder %s26, 0
      %p74 = por %p72, %p73
      %s75 = ssub.s32 %s20, %s27
      %p76 = scmp.eq.s32.totalorder %s75, 0
      %s78 = sadd.s32 %s77, 1
      %s79 = scalar_select %p76, %s77, %s78
      %p82 = pneg %p76
      %p83 = scmp.eq.s32.totalorder %s20, 1
      %p84 = por %p82, %p83
      %p85 = scmp.ne.s32.totalorder %s77, %s80
      %p86 = scmp.eq.s32.totalorder %s20, 0
      %p87 = por %p85, %p86
      %p88 = scmp.ne.s32.totalorder %s77, %s80
      %p89 = scmp.eq.s32.totalorder %s25, 1
      %p90 = por %p88, %p89
      %p91 = scmp.ne.s32.totalorder %s80, %s81
      %p92 = scmp.eq.s32.totalorder %s25, 0
      %p93 = por %p91, %p92
      %p94 = scmp.ne.s32.totalorder %s80, %s81
      %p95 = scmp.eq.s32.totalorder %s26, 1
      %p96 = por %p94, %p95
      %p98 = scmp.ne.s32.totalorder %s81, %s97
      %p99 = scmp.eq.s32.totalorder %s26, 0
      %p100 = por %p98, %p99
      %s102 = sadd.s32 %s101, 1
      %p105 = scmp.eq.s32.totalorder %s20, 1
      %p106 = scmp.ne.s32.totalorder %s101, %s103
      %p107 = scmp.eq.s32.totalorder %s20, 0
      %p108 = por %p106, %p107
      %p109 = scmp.ne.s32.totalorder %s101, %s103
      %p110 = scmp.eq.s32.totalorder %s25, 1
      %p111 = por %p109, %p110
      %p112 = scmp.ne.s32.totalorder %s103, %s104
      %p113 = scmp.eq.s32.totalorder %s25, 0
      %p114 = por %p112, %p113
      %p115 = scmp.ne.s32.totalorder %s103, %s104
      %p116 = scmp.eq.s32.totalorder %s26, 1
      %p117 = por %p115, %p116
      %p119 = scmp.ne.s32.totalorder %s104, %s118
      %p120 = scmp.eq.s32.totalorder %s26, 0
      %p121 = por %p119, %p120
      %s123 = sadd.s32 %s122, 1
      %p126 = scmp.eq.s32.totalorder %s20, 1
      %p127 = scmp.ne.s32.totalorder %s122, %s124
      %p128 = scmp.eq.s32.totalorder %s20, 0
      %p129 = por %p127, %p128
      %p130 = scmp.ne.s32.totalorder %s122, %s124
      %p131 = scmp.eq.s32.totalorder %s25, 1
      %p132 = por %p130, %p131
      %p133 = scmp.ne.s32.totalorder %s124, %s125
      %p134 = scmp.eq.s32.totalorder %s25, 0
      %p135 = por %p133, %p134
      %p136 = scmp.ne.s32.totalorder %s124, %s125
      %p137 = scmp.eq.s32.totalorder %s26, 1
      %p138 = por %p136, %p137
      %p140 = scmp.ne.s32.totalorder %s125, %s139
      %p141 = scmp.eq.s32.totalorder %s26, 0
      %p142 = por %p140, %p141
      %s144 = sadd.s32 %s143, 1
      %p147 = scmp.eq.s32.totalorder %s20, 1
      %p148 = scmp.ne.s32.totalorder %s143, %s145
      %p149 = scmp.eq.s32.totalorder %s20, 0
      %p150 = por %p148, %p149
      %p151 = scmp.ne.s32.totalorder %s143, %s145
      %p152 = scmp.eq.s32.totalorder %s25, 1
      %p153 = por %p151, %p152
      %p154 = scmp.ne.s32.totalorder %s145, %s146
      %p155 = scmp.eq.s32.totalorder %s25, 0
      %p156 = por %p154, %p155
      %p157 = scmp.ne.s32.totalorder %s145, %s146
      %p158 = scmp.eq.s32.totalorder %s26, 1
      %p159 = por %p157, %p158
      %p161 = scmp.ne.s32.totalorder %s146, %s160
      %p162 = scmp.eq.s32.totalorder %s26, 0
      %p163 = por %p161, %p162
      %s164 = ssub.s32 %s20, %s27
      %p165 = scmp.eq.s32.totalorder %s164, 0
      %s167 = sadd.s32 %s166, 1
      %s168 = scalar_select %p165, %s166, %s167
      %p171 = pneg %p165
      %p172 = scmp.eq.s32.totalorder %s20, 1
      %p173 = por %p171, %p172
      %p174 = scmp.ne.s32.totalorder %s166, %s169
      %p175 = scmp.eq.s32.totalorder %s20, 0
      %p176 = por %p174, %p175
      %p177 = scmp.ne.s32.totalorder %s166, %s169
      %p178 = scmp.eq.s32.totalorder %s25, 1
      %p179 = por %p177, %p178
      %p180 = scmp.ne.s32.totalorder %s169, %s170
      %p181 = scmp.eq.s32.totalorder %s25, 0
      %p182 = por %p180, %p181
      %p183 = scmp.ne.s32.totalorder %s169, %s170
      %p184 = scmp.eq.s32.totalorder %s26, 1
      %p185 = por %p183, %p184
      %p187 = scmp.ne.s32.totalorder %s170, %s186
      %p188 = scmp.eq.s32.totalorder %s26, 0
      %p189 = por %p187, %p188
      %p190 = scmp.le.s32.totalorder 1, %s20
      %p191 = scmp.lt.s32.totalorder %s20, 3
      %p192 = pnand %p190, %p191
      %p193 = pneg %p192
      // Predicated region
      $region9: #{tpu_custom_call.1} parent=5 // pred_check
        _
      $region10: #{tpu_custom_call.1} parent=5 // pred_check_branch
        %195 = sbr.rel (%p192) target = $region12
      $region11: #{tpu_custom_call.1} parent=5 // pred_region
        %s196 = ssub.s32 %s20, 1
        // Predicated region
        $region13: #{tpu_custom_call.1} parent=11 // pred_check
          %p197 = pneg %p41
        $region14: #{tpu_custom_call.1} parent=11 // pred_check_branch
          %199 = sbr.rel (%p197) target = $region16
        $region15: #{tpu_custom_call.1} parent=11 // pred_region
          %201 = vsyncadd [#allocation3], 0
          %s202 = sshll.u32 %s0, 4
          %s203 = int_to_ptr.hbm [resolvable:$true] %s202
          %s204 = sshll.u32 [#allocation2], 4
          %s205 = int_to_ptr.vmem [resolvable:$true] %s204
          %210 = dma.hbm_to_vmem [thread:$0]  %s203, 256, %s205, [#allocation3], 128, 128, 8
        $region16: #{tpu_custom_call.1} parent=11 // pred_fallthru
          _
        // Predicated region
        $region17: #{tpu_custom_call.1} parent=11 // pred_check
          %p211 = pneg %p114
        $region18: #{tpu_custom_call.1} parent=11 // pred_check_branch
          %213 = sbr.rel (%p211) target = $region20
        $region19: #{tpu_custom_call.1} parent=11 // pred_region
          %215 = vsyncadd [#allocation9], 0
          %s216 = sshll.u32 %s3, 4
          %s217 = int_to_ptr.hbm [resolvable:$true] %s216
          %s218 = sshll.u32 [#allocation8], 4
          %s219 = int_to_ptr.vmem [resolvable:$true] %s218
          %224 = dma.hbm_to_vmem [thread:$0]  %s217, 2048, %s219, [#allocation9], 128, 128, 8
        $region20: #{tpu_custom_call.1} parent=11 // pred_fallthru
          _
        // Predicated region
        $region21: #{tpu_custom_call.1} parent=11 // pred_check
          %p225 = pneg %p135
        $region22: #{tpu_custom_call.1} parent=11 // pred_check_branch
          %227 = sbr.rel (%p225) target = $region24
        $region23: #{tpu_custom_call.1} parent=11 // pred_region
          %229 = vsyncadd [#allocation9], 0
          %s230 = sshll.u32 %s4, 4
          %s231 = int_to_ptr.hbm [resolvable:$true] %s230
          %s232 = sshll.u32 [#allocation10], 4
          %s233 = int_to_ptr.vmem [resolvable:$true] %s232
          %238 = dma.hbm_to_vmem [thread:$0]  %s231, 2048, %s233, [#allocation9], 128, 128, 8
        $region24: #{tpu_custom_call.1} parent=11 // pred_fallthru
          _
        // Predicated region
        $region25: #{tpu_custom_call.1} parent=11 // pred_check
          %p239 = pneg %p156
        $region26: #{tpu_custom_call.1} parent=11 // pred_check_branch
          %241 = sbr.rel (%p239) target = $region28
        $region27: #{tpu_custom_call.1} parent=11 // pred_region
          _
        $region28: #{tpu_custom_call.1} parent=11 // pred_fallthru
          _
      $region12: #{tpu_custom_call.1} parent=5 // pred_fallthru
        _
      %p242 = scmp.lt.s32.totalorder %s20, 2
      // Predicated region
      $region29: #{tpu_custom_call.1} parent=5 // pred_check
        %p243 = pneg %p242
      $region30: #{tpu_custom_call.1} parent=5 // pred_check_branch
        %245 = sbr.rel (%p243) target = $region32
      $region31: #{tpu_custom_call.1} parent=5 // pred_region
        // Predicated region
        $region33: #{tpu_custom_call.1} parent=31 // pred_check
          %p246 = pneg %p61
        $region34: #{tpu_custom_call.1} parent=31 // pred_check_branch
          %248 = sbr.rel (%p246) target = $region36
        $region35: #{tpu_custom_call.1} parent=31 // pred_region
          %s249 = sand.u32 %s20, 1
          %s250 = scalar_lea.sflag [#allocation6], %s249
          %s251 = sand.u32 %s51, 1
          %s252 = smul.addr %s251, 16
          %s253 = scalar_lea.vmem [#allocation5], %s252
          %255 = vsyncadd %s250, 0
          %s256 = smul.addr %s20, 8
          %s257 = scalar_lea.hbm %s1, %s256
          %s258 = sshll.u32 %s257, 4
          %s259 = int_to_ptr.hbm [resolvable:$true] %s258
          %s260 = sshll.u32 %s253, 4
          %s261 = int_to_ptr.vmem [resolvable:$true] %s260
          %266 = dma.hbm_to_vmem [thread:$0]  %s259, 256, %s261, %s250, 256, 128, 8
        $region36: #{tpu_custom_call.1} parent=31 // pred_fallthru
          _
        // Predicated region
        $region37: #{tpu_custom_call.1} parent=31 // pred_check
          %p267 = pneg %p87
        $region38: #{tpu_custom_call.1} parent=31 // pred_check_branch
          %269 = sbr.rel (%p267) target = $region40
        $region39: #{tpu_custom_call.1} parent=31 // pred_region
          %s270 = sand.u32 %s20, 1
          %s271 = scalar_lea.sflag [#allocation6], %s270
          %s272 = sand.u32 %s77, 1
          %s273 = smul.addr %s272, 16
          %s274 = scalar_lea.vmem [#allocation7], %s273
          %276 = vsyncadd %s271, 0
          %s277 = smul.addr %s20, 8
          %s278 = scalar_lea.hbm %s2, %s277
          %s279 = sshll.u32 %s278, 4
          %s280 = int_to_ptr.hbm [resolvable:$true] %s279
          %s281 = sshll.u32 %s274, 4
          %s282 = int_to_ptr.vmem [resolvable:$true] %s281
          %287 = dma.hbm_to_vmem [thread:$0]  %s280, 256, %s282, %s271, 256, 128, 8
        $region40: #{tpu_custom_call.1} parent=31 // pred_fallthru
          _
      $region32: #{tpu_custom_call.1} parent=5 // pred_fallthru
        _
      %p288 = scmp.le.s32.totalorder 1, %s20
      %p289 = scmp.lt.s32.totalorder %s20, 3
      %p290 = pnand %p288, %p289
      %p291 = pneg %p290
      // Predicated region
      $region41: #{tpu_custom_call.1} parent=5 // pred_check
        _
      $region42: #{tpu_custom_call.1} parent=5 // pred_check_branch
        %293 = sbr.rel (%p290) target = $region44
      $region43: #{tpu_custom_call.1} parent=5 // pred_region
        %s294 = ssub.s32 %s20, 1
        // Predicated region
        $region45: #{tpu_custom_call.1} parent=43 // pred_check
          %p295 = pneg %p41
        $region46: #{tpu_custom_call.1} parent=43 // pred_check_branch
          %297 = sbr.rel (%p295) target = $region48
        $region47: #{tpu_custom_call.1} parent=43 // pred_region
          %299 = dma.done [#allocation3], 256
        $region48: #{tpu_custom_call.1} parent=43 // pred_fallthru
          _
        %s300 = sand.u32 %s25, 1
        %s301 = scalar_lea.sflag [#allocation6], %s300
        %s302 = sand.u32 %s54, 1
        %s303 = smul.addr %s302, 16
        %s304 = scalar_lea.vmem [#allocation5], %s303
        // Predicated region
        $region49: #{tpu_custom_call.1} parent=43 // pred_check
          %p305 = pneg %p67
        $region50: #{tpu_custom_call.1} parent=43 // pred_check_branch
          %307 = sbr.rel (%p305) target = $region52
        $region51: #{tpu_custom_call.1} parent=43 // pred_region
          %309 = dma.done %s301, 256
        $region52: #{tpu_custom_call.1} parent=43 // pred_fallthru
          _
        %s310 = sand.u32 %s25, 1
        %s311 = scalar_lea.sflag [#allocation6], %s310
        %s312 = sand.u32 %s80, 1
        %s313 = smul.addr %s312, 16
        %s314 = scalar_lea.vmem [#allocation7], %s313
        // Predicated region
        $region53: #{tpu_custom_call.1} parent=43 // pred_check
          %p315 = pneg %p93
        $region54: #{tpu_custom_call.1} parent=43 // pred_check_branch
          %317 = sbr.rel (%p315) target = $region56
        $region55: #{tpu_custom_call.1} parent=43 // pred_region
          %319 = dma.done %s311, 256
        $region56: #{tpu_custom_call.1} parent=43 // pred_fallthru
          _
        // Predicated region
        $region57: #{tpu_custom_call.1} parent=43 // pred_check
          %p320 = pneg %p114
        $region58: #{tpu_custom_call.1} parent=43 // pred_check_branch
          %322 = sbr.rel (%p320) target = $region60
        $region59: #{tpu_custom_call.1} parent=43 // pred_region
          %324 = dma.done [#allocation9], 2048
        $region60: #{tpu_custom_call.1} parent=43 // pred_fallthru
          _
        // Predicated region
        $region61: #{tpu_custom_call.1} parent=43 // pred_check
          %p325 = pneg %p135
        $region62: #{tpu_custom_call.1} parent=43 // pred_check_branch
          %327 = sbr.rel (%p325) target = $region64
        $region63: #{tpu_custom_call.1} parent=43 // pred_region
          %329 = dma.done [#allocation9], 2048
        $region64: #{tpu_custom_call.1} parent=43 // pred_fallthru
          _
        %p330 = pneg %p41
        %p331 = pneg %p38
        %s332 = sand.u32 %s25, 1
        %s333 = scalar_lea.sflag [#allocation6], %s332
        %s334 = sand.u32 %s54, 1
        %s335 = smul.addr %s334, 16
        %s336 = scalar_lea.vmem [#allocation5], %s335
        %p337 = pneg %p67
        %p338 = pneg %p64
        %s339 = sand.u32 %s25, 1
        %s340 = scalar_lea.sflag [#allocation6], %s339
        %s341 = sand.u32 %s80, 1
        %s342 = smul.addr %s341, 16
        %s343 = scalar_lea.vmem [#allocation7], %s342
        %p344 = pneg %p93
        %p345 = pneg %p90
        %p346 = pneg %p114
        %p347 = pneg %p111
        %p348 = pneg %p135
        %p349 = pneg %p132
        %p350 = pneg %p156
        %p351 = pneg %p153
        %p352 = pneg %p182
        %p353 = pneg %p179
        %s354 = sand.u32 %s169, 1
        %s355 = scalar_lea.sflag [#allocation4], %s354
        %s356 = sand.u32 %s169, 1
        %s357 = smul.addr %s356, 16
        %s358 = scalar_lea.vmem [#allocation11], %s357
        %v359 = vld [vmem:[#allocation2] sm:$0xff]
        %v360 = vld [vmem:[#allocation2 + $0x8] sm:$0xff]
        %v361 = vld [vmem:[#allocation8] sm:$0xff]
        %v362 = vld [vmem:[#allocation8 + $0x8] sm:$0xff]
        %v363 = vld [vmem:[#allocation8 + $0x10] sm:$0xff]
        %v364 = vld [vmem:[#allocation8 + $0x18] sm:$0xff]
        %v365 = vld [vmem:[#allocation8 + $0x20] sm:$0xff]
        %v366 = vld [vmem:[#allocation8 + $0x28] sm:$0xff]
        %v367 = vld [vmem:[#allocation8 + $0x30] sm:$0xff]
        %v368 = vld [vmem:[#allocation8 + $0x38] sm:$0xff]
        %v369 = vld [vmem:[#allocation8 + $0x40] sm:$0xff]
        %v370 = vld [vmem:[#allocation8 + $0x48] sm:$0xff]
        %v371 = vld [vmem:[#allocation8 + $0x50] sm:$0xff]
        %v372 = vld [vmem:[#allocation8 + $0x58] sm:$0xff]
        %v373 = vld [vmem:[#allocation8 + $0x60] sm:$0xff]
        %v374 = vld [vmem:[#allocation8 + $0x68] sm:$0xff]
        %v375 = vld [vmem:[#allocation8 + $0x70] sm:$0xff]
        %v376 = vld [vmem:[#allocation8 + $0x78] sm:$0xff]
        %v377 = vld [vmem:[#allocation10] sm:$0xff]
        %v378 = vld [vmem:[#allocation10 + $0x8] sm:$0xff]
        %v379 = vld [vmem:[#allocation10 + $0x10] sm:$0xff]
        %v380 = vld [vmem:[#allocation10 + $0x18] sm:$0xff]
        %v381 = vld [vmem:[#allocation10 + $0x20] sm:$0xff]
        %v382 = vld [vmem:[#allocation10 + $0x28] sm:$0xff]
        %v383 = vld [vmem:[#allocation10 + $0x30] sm:$0xff]
        %v384 = vld [vmem:[#allocation10 + $0x38] sm:$0xff]
        %v385 = vld [vmem:[#allocation10 + $0x40] sm:$0xff]
        %v386 = vld [vmem:[#allocation10 + $0x48] sm:$0xff]
        %v387 = vld [vmem:[#allocation10 + $0x50] sm:$0xff]
        %v388 = vld [vmem:[#allocation10 + $0x58] sm:$0xff]
        %v389 = vld [vmem:[#allocation10 + $0x60] sm:$0xff]
        %v390 = vld [vmem:[#allocation10 + $0x68] sm:$0xff]
        %v391 = vld [vmem:[#allocation10 + $0x70] sm:$0xff]
        %v392 = vld [vmem:[#allocation10 + $0x78] sm:$0xff]
        %v393 = vld [vmem:[%s5] sm:$0x7]
        %v394 = vperm.slane %v393, 0
        %v395 = vperm.slane %v393, 1
        %v396 = vperm.slane %v393, 2
        %v397 = vld [vmem:[%s314] sm:$0xff]
        %v398 = vld [vmem:[%s314 + $0x8] sm:$0xff]
        %v399 = vmul.f32 %v397, 0.3
        %v400 = vmul.f32 %v398, 0.3
        %v401 = vld [vmem:[%s304] sm:$0xff]
        %v402 = vld [vmem:[%s304 + $0x8] sm:$0xff]
        %vm403 = vcmask 130048
        %v405 = vsel %vm403, %v359, 0
        %v408 = vsel %vm403, %v360, 0
        %410 = vmatpush.msra.mxu0 0.0
        %411 = vmatpush.msra.mxu0 0.0
        %412 = vmatpush.msra.mxu0 0.0
        %413 = vmatpush.msra.mxu0 0.0
        %414 = vmatpush.msra.mxu0 0.0
        %415 = vmatpush.msra.mxu0 0.0
        %416 = vmatpush.msra.mxu0 0.0
        %417 = vmatpush.msra.mxu0 0.0
        %418 = vmatpush.msra.mxu0 0.0
        %419 = vmatpush.msra.mxu0 0.0
        %420 = vmatpush.msra.mxu0 0.0
        %421 = vmatpush.msra.mxu0 0.0
        %422 = vmatpush.msra.mxu0 0.0
        %423 = vmatpush.msra.mxu0 0.0
        %424 = vmatpush.msra.mxu0 %v402
        %425 = vmatpush.msra.mxu0 %v401
        %426 = vmatmul.f32.gmra.mxu0 %v405
        %v427 = vpop.f32.mrf.mxu0
        %v428 = vadd.f32 %v399, %v427
        %429 = vmatmul.f32.gmra.mxu0 %v408
        %v430 = vpop.f32.mrf.mxu0
        %v431 = vadd.f32 %v400, %v430
        %432 = vdwg.mxu0
        %433 = vmatpush.msra.mxu0 %v376
        %434 = vmatpush.msra.mxu0 %v375
        %435 = vmatpush.msra.mxu0 %v374
        %436 = vmatpush.msra.mxu0 %v373
        %437 = vmatpush.msra.mxu0 %v372
        %438 = vmatpush.msra.mxu0 %v371
        %439 = vmatpush.msra.mxu0 %v370
        %440 = vmatpush.msra.mxu0 %v369
        %441 = vmatpush.msra.mxu0 %v368
        %442 = vmatpush.msra.mxu0 %v367
        %443 = vmatpush.msra.mxu0 %v366
        %444 = vmatpush.msra.mxu0 %v365
        %445 = vmatpush.msra.mxu0 %v364
        %446 = vmatpush.msra.mxu0 %v363
        %447 = vmatpush.msra.mxu0 %v362
        %448 = vmatpush.msra.mxu0 %v361
        %449 = vmatmul.f32.gmra.mxu0 %v428
        %v450 = vpop.f32.mrf.mxu0
        %v451 = vadd.f32 %v394, %v450
        %452 = vmatmul.f32.gmra.mxu0 %v431
        %v453 = vpop.f32.mrf.mxu0
        %v454 = vadd.f32 %v394, %v453
        %455 = vdwg.mxu0
        %456 = vmatpush.msra.mxu0 %v392
        %457 = vmatpush.msra.mxu0 %v391
        %458 = vmatpush.msra.mxu0 %v390
        %459 = vmatpush.msra.mxu0 %v389
        %460 = vmatpush.msra.mxu0 %v388
        %461 = vmatpush.msra.mxu0 %v387
        %462 = vmatpush.msra.mxu0 %v386
        %463 = vmatpush.msra.mxu0 %v385
        %464 = vmatpush.msra.mxu0 %v384
        %465 = vmatpush.msra.mxu0 %v383
        %466 = vmatpush.msra.mxu0 %v382
        %467 = vmatpush.msra.mxu0 %v381
        %468 = vmatpush.msra.mxu0 %v380
        %469 = vmatpush.msra.mxu0 %v379
        %470 = vmatpush.msra.mxu0 %v378
        %471 = vmatpush.msra.mxu0 %v377
        %472 = vmatmul.f32.gmra.mxu0 %v451
        %v473 = vpop.f32.mrf.mxu0
        %v474 = vadd.f32 0.0, %v473
        %475 = vmatmul.f32.gmra.mxu0 %v454
        %v476 = vpop.f32.mrf.mxu0
        %v477 = vadd.f32 0.0, %v476
        %478 = vdwg.mxu0
        %v479 = vsub.f32 %v451, %v474
        %v480 = vsub.f32 %v454, %v477
        %v481 = vmul.f32 %v479, %v479
        %v482 = vmul.f32 %v480, %v480
        %483 = vmatpush.msra.mxu0 %v392
        %484 = vmatpush.msra.mxu0 %v391
        %485 = vmatpush.msra.mxu0 %v390
        %486 = vmatpush.msra.mxu0 %v389
        %487 = vmatpush.msra.mxu0 %v388
        %488 = vmatpush.msra.mxu0 %v387
        %489 = vmatpush.msra.mxu0 %v386
        %490 = vmatpush.msra.mxu0 %v385
        %491 = vmatpush.msra.mxu0 %v384
        %492 = vmatpush.msra.mxu0 %v383
        %493 = vmatpush.msra.mxu0 %v382
        %494 = vmatpush.msra.mxu0 %v381
        %495 = vmatpush.msra.mxu0 %v380
        %496 = vmatpush.msra.mxu0 %v379
        %497 = vmatpush.msra.mxu0 %v378
        %498 = vmatpush.msra.mxu0 %v377
        %499 = vmatmul.f32.gmra.mxu0 %v481
        %v500 = vpop.f32.mrf.mxu0
        %v501 = vadd.f32 1e-10, %v500
        %502 = vmatmul.f32.gmra.mxu0 %v482
        %v503 = vpop.f32.mrf.mxu0
        %v504 = vadd.f32 1e-10, %v503
        %505 = vdwg.mxu0
        %v506 = vrsqrt.pop %v501
        %v507 = vmul.f32 %v506, %v501
        %v508 = vmul.f32 %v507, %v506
        %v509 = vmul.f32 0.5, %v508
        %v510 = vsub.f32 1.5, %v509
        %v511 = vmul.f32 %v506, %v510
        %vm512 = vweird.f32 %v501
        %vm513 = vweird.f32 %v506
        %vm514 = vmor %vm512, %vm513
        %v515 = vsel %vm514, %v506, %v511
        %v516 = vrsqrt.pop %v504
        %v517 = vmul.f32 %v516, %v504
        %v518 = vmul.f32 %v517, %v516
        %v519 = vmul.f32 0.5, %v518
        %v520 = vsub.f32 1.5, %v519
        %v521 = vmul.f32 %v516, %v520
        %vm522 = vweird.f32 %v504
        %vm523 = vweird.f32 %v516
        %vm524 = vmor %vm522, %vm523
        %v525 = vsel %vm524, %v516, %v521
        %v526 = vmul.f32 %v479, %v515
        %v527 = vmul.f32 %v480, %v525
        %v528 = vmul.f32 %v526, %v395
        %v529 = vmul.f32 %v527, %v395
        %v530 = vadd.f32 %v528, %v396
        %v531 = vadd.f32 %v529, %v396
        %532 = vmatpush.msra.mxu0 0.0
        %533 = vmatpush.msra.mxu0 0.0
        %534 = vmatpush.msra.mxu0 0.0
        %535 = vmatpush.msra.mxu0 0.0
        %536 = vmatpush.msra.mxu0 0.0
        %537 = vmatpush.msra.mxu0 0.0
        %538 = vmatpush.msra.mxu0 0.0
        %539 = vmatpush.msra.mxu0 0.0
        %540 = vmatpush.msra.mxu0 0.0
        %541 = vmatpush.msra.mxu0 0.0
        %542 = vmatpush.msra.mxu0 0.0
        %543 = vmatpush.msra.mxu0 0.0
        %544 = vmatpush.msra.mxu0 0.0
        %545 = vmatpush.msra.mxu0 0.0
        %546 = vmatpush.msra.mxu0 %v531
        %547 = vmatpush.msra.mxu0 %v530
        %548 = vmatmul.f32.gmra.mxu0 %v405
        %v549 = vpop.f32.mrf.mxu0
        %v550 = vadd.f32 %v399, %v549
        %551 = vmatmul.f32.gmra.mxu0 %v408
        %v552 = vpop.f32.mrf.mxu0
        %v553 = vadd.f32 %v400, %v552
        %554 = vdwg.mxu0
        %555 = vmatpush.msra.mxu0 %v376
        %556 = vmatpush.msra.mxu0 %v375
        %557 = vmatpush.msra.mxu0 %v374
        %558 = vmatpush.msra.mxu0 %v373
        %559 = vmatpush.msra.mxu0 %v372
        %560 = vmatpush.msra.mxu0 %v371
        %561 = vmatpush.msra.mxu0 %v370
        %562 = vmatpush.msra.mxu0 %v369
        %563 = vmatpush.msra.mxu0 %v368
        %564 = vmatpush.msra.mxu0 %v367
        %565 = vmatpush.msra.mxu0 %v366
        %566 = vmatpush.msra.mxu0 %v365
        %567 = vmatpush.msra.mxu0 %v364
        %568 = vmatpush.msra.mxu0 %v363
        %569 = vmatpush.msra.mxu0 %v362
        %570 = vmatpush.msra.mxu0 %v361
        %571 = vmatmul.f32.gmra.mxu0 %v550
        %v572 = vpop.f32.mrf.mxu0
        %v573 = vadd.f32 %v394, %v572
        %574 = vmatmul.f32.gmra.mxu0 %v553
        %v575 = vpop.f32.mrf.mxu0
        %v576 = vadd.f32 %v394, %v575
        %577 = vdwg.mxu0
        %578 = vmatpush.msra.mxu0 %v392
        %579 = vmatpush.msra.mxu0 %v391
        %580 = vmatpush.msra.mxu0 %v390
        %581 = vmatpush.msra.mxu0 %v389
        %582 = vmatpush.msra.mxu0 %v388
        %583 = vmatpush.msra.mxu0 %v387
        %584 = vmatpush.msra.mxu0 %v386
        %585 = vmatpush.msra.mxu0 %v385
        %586 = vmatpush.msra.mxu0 %v384
        %587 = vmatpush.msra.mxu0 %v383
        %588 = vmatpush.msra.mxu0 %v382
        %589 = vmatpush.msra.mxu0 %v381
        %590 = vmatpush.msra.mxu0 %v380
        %591 = vmatpush.msra.mxu0 %v379
        %592 = vmatpush.msra.mxu0 %v378
        %593 = vmatpush.msra.mxu0 %v377
        %594 = vmatmul.f32.gmra.mxu0 %v573
        %v595 = vpop.f32.mrf.mxu0
        %v596 = vadd.f32 0.0, %v595
        %597 = vmatmul.f32.gmra.mxu0 %v576
        %v598 = vpop.f32.mrf.mxu0
        %v599 = vadd.f32 0.0, %v598
        %600 = vdwg.mxu0
        %v601 = vsub.f32 %v573, %v596
        %v602 = vsub.f32 %v576, %v599
        %v603 = vmul.f32 %v601, %v601
        %v604 = vmul.f32 %v602, %v602
        %605 = vmatpush.msra.mxu0 %v392
        %606 = vmatpush.msra.mxu0 %v391
        %607 = vmatpush.msra.mxu0 %v390
        %608 = vmatpush.msra.mxu0 %v389
        %609 = vmatpush.msra.mxu0 %v388
        %610 = vmatpush.msra.mxu0 %v387
        %611 = vmatpush.msra.mxu0 %v386
        %612 = vmatpush.msra.mxu0 %v385
        %613 = vmatpush.msra.mxu0 %v384
        %614 = vmatpush.msra.mxu0 %v383
        %615 = vmatpush.msra.mxu0 %v382
        %616 = vmatpush.msra.mxu0 %v381
        %617 = vmatpush.msra.mxu0 %v380
        %618 = vmatpush.msra.mxu0 %v379
        %619 = vmatpush.msra.mxu0 %v378
        %620 = vmatpush.msra.mxu0 %v377
        %621 = vmatmul.f32.gmra.mxu0 %v603
        %v622 = vpop.f32.mrf.mxu0
        %v623 = vadd.f32 1e-10, %v622
        %624 = vmatmul.f32.gmra.mxu0 %v604
        %v625 = vpop.f32.mrf.mxu0
        %v626 = vadd.f32 1e-10, %v625
        %627 = vdwg.mxu0
        %v628 = vrsqrt.pop %v623
        %v629 = vmul.f32 %v628, %v623
        %v630 = vmul.f32 %v629, %v628
        %v631 = vmul.f32 0.5, %v630
        %v632 = vsub.f32 1.5, %v631
        %v633 = vmul.f32 %v628, %v632
        %vm634 = vweird.f32 %v623
        %vm635 = vweird.f32 %v628
        %vm636 = vmor %vm634, %vm635
        %v637 = vsel %vm636, %v628, %v633
        %v638 = vrsqrt.pop %v626
        %v639 = vmul.f32 %v638, %v626
        %v640 = vmul.f32 %v639, %v638
        %v641 = vmul.f32 0.5, %v640
        %v642 = vsub.f32 1.5, %v641
        %v643 = vmul.f32 %v638, %v642
        %vm644 = vweird.f32 %v626
        %vm645 = vweird.f32 %v638
        %vm646 = vmor %vm644, %vm645
        %v647 = vsel %vm646, %v638, %v643
        %v648 = vmul.f32 %v601, %v637
        %v649 = vmul.f32 %v602, %v647
        %v650 = vmul.f32 %v648, %v395
        %v651 = vmul.f32 %v649, %v395
        %v652 = vadd.f32 %v650, %v396
        %v653 = vadd.f32 %v651, %v396
        %654 = vst [vmem:[%s358] sm:$0xff] %v652
        %655 = vst [vmem:[%s358 + $0x8] sm:$0xff] %v653
        %s656 = sand.u32 %s169, 1
        %s657 = scalar_lea.sflag [#allocation4], %s656
        %s658 = sand.u32 %s169, 1
        %s659 = smul.addr %s658, 16
        %s660 = scalar_lea.vmem [#allocation11], %s659
        // Predicated region
        $region65: #{tpu_custom_call.1} parent=43 // pred_check
          %p661 = pneg %p179
        $region66: #{tpu_custom_call.1} parent=43 // pred_check_branch
          %663 = sbr.rel (%p661) target = $region68
        $region67: #{tpu_custom_call.1} parent=43 // pred_region
          %665 = vsyncadd %s657, 0
          %s666 = smul.addr %s25, 8
          %s667 = scalar_lea.hbm %s6, %s666
          %s668 = sshll.u32 %s660, 4
          %s669 = int_to_ptr.vmem [resolvable:$true] %s668
          %s670 = sshll.u32 %s667, 4
          %s671 = int_to_ptr.hbm [resolvable:$true] %s670
          %676 = dma.vmem_to_hbm [thread:$0]  %s669, 256, %s671, %s657, 128, 256, 8
        $region68: #{tpu_custom_call.1} parent=43 // pred_fallthru
          _
      $region44: #{tpu_custom_call.1} parent=5 // pred_fallthru
        _
      %p677 = scmp.le.s32.totalorder 2, %s20
      // Predicated region
      $region69: #{tpu_custom_call.1} parent=5 // pred_check
        %p678 = pneg %p677
      $region70: #{tpu_custom_call.1} parent=5 // pred_check_branch
        %680 = sbr.rel (%p678) target = $region72
      $region71: #{tpu_custom_call.1} parent=5 // pred_region
        %s681 = ssub.s32 %s20, 2
        // Predicated region
        $region73: #{tpu_custom_call.1} parent=71 // pred_check
          %p682 = pneg %p185
        $region74: #{tpu_custom_call.1} parent=71 // pred_check_branch
          %684 = sbr.rel (%p682) target = $region76
        $region75: #{tpu_custom_call.1} parent=71 // pred_region
          %s685 = sand.u32 %s170, 1
          %s686 = scalar_lea.sflag [#allocation4], %s685
          %s687 = sand.u32 %s170, 1
          %s688 = smul.addr %s687, 16
          %s689 = scalar_lea.vmem [#allocation11], %s688
          %691 = dma.done %s686, 256
        $region76: #{tpu_custom_call.1} parent=71 // pred_fallthru
          _
      $region72: #{tpu_custom_call.1} parent=5 // pred_fallthru
        _
    $region6: #{tpu_custom_call.1} parent=1 // loop_footer
      %s24 = sadd.s32 1, %s20
    $region7: #{tpu_custom_call.1} parent=1 // loop_footer_branch
      %19 = sbr.rel target = $region3
    $region8: #{tpu_custom_call.1} parent=1 // loop_exit
      _
    %692 = vsyncpa [#allocation3], 1
    %s693 = scalar_lea.sflag [#allocation3], 1
    %694 = vsyncpa %s693, 1
    %695 = vsyncpa [#allocation6], 1
    %s696 = scalar_lea.sflag [#allocation6], 1
    %697 = vsyncpa %s696, 1
    %698 = vsyncpa [#allocation9], 1
    %699 = vsyncpa [#allocation4], 1
    %s700 = scalar_lea.sflag [#allocation4], 1
    %701 = vsyncpa %s700, 1

</llo_original>
